<compile_context>
chip_gen: v7x
topology: tpu7x:2x2x1
jax: 0.10.0
libtpu: 0.0.40
codegen_flags: <defaults>
</compile_context>

<pallas_src>
import functools

import jax
import jax.numpy as jnp
from jax.experimental import pallas as pl
from jax.experimental.pallas import tpu as pltpu


def _synapse_kernel(lr_ref, pre_ref, post_ref, reward_ref, h_ref,
                    w_ref, wr_ref, b_ref, out_ref, newh_ref, *,
                    hidden_size, gate_pad):
    """One batch tile fully resident in VMEM.

    lr_ref    : SMEM (1,1)        learnable learning rate
    pre_ref   : (TB, H)           pre-synaptic neurons
    post_ref  : (TB, H)           post-synaptic neurons
    reward_ref: (TB, 1)           reward signal
    h_ref     : (TB, H)           previous hidden state
    w_ref     : (3H, 4*GP)        fused weights, rows=[pre|post|h],
                                  col groups=[r_sum|z_sum|n_x|n_h]
    wr_ref    : (1, 4*GP)         reward column of W_ih, per gate group
    b_ref     : (1, 4*GP)         biases (r/z summed, n split into x/h parts)
    out_ref   : (TB, H)           Synapse_output
    newh_ref  : (TB, H)           updated_hidden_state (aliased with h's buffer)
    """
    H, GP = hidden_size, gate_pad

    pre = pre_ref[...].astype(jnp.float32)
    post = post_ref[...].astype(jnp.float32)
    h = h_ref[...].astype(jnp.float32)
    reward = reward_ref[...].astype(jnp.float32)            # (TB, 1)

    # Single fused MXU pass over [pre | post | h]; reward enters as a rank-1
    # broadcast (one weight row scaled per batch element), not a matmul.
    u = jnp.concatenate([pre, post, h], axis=1)              # (TB, 3H)
    g = jnp.dot(u, w_ref[...], preferred_element_type=jnp.float32)
    g = g + reward * wr_ref[...] + b_ref[...]                # (TB, 4*GP)

    # Gate slices all start on 128-lane boundaries (GP is a multiple of 128),
    # so no cross-lane shuffles are required.  PyTorch GRUCell gate math:
    r = jax.nn.sigmoid(g[:, 0:H])                                      # reset
    z = jax.nn.sigmoid(g[:, GP:GP + H])                                # update
    n = jnp.tanh(g[:, 2 * GP:2 * GP + H] + r * g[:, 3 * GP:3 * GP + H])  # new
    gru_out = (1.0 - z) * n + z * h

    lr = lr_ref[0, 0]
    new_h = h + gru_out * lr

    newh_ref[...] = new_h.astype(newh_ref.dtype)
    out_ref[...] = (new_h * pre).astype(out_ref.dtype)


def prepare_synapse_params(weight_ih, weight_hh, bias_ih, bias_hh):
    """One-time re-layout of torch.nn.GRUCell params into the fused kernel layout.

    weight_ih: (3H, 2H+1)  [pre(H), post(H), reward(1)] columns, gate rows (r,z,n)
    weight_hh: (3H, H)
    bias_ih, bias_hh: (3H,)

    Returns (w_big, w_reward_row, bias_row).  Call once (param init), not per step.
    """
    three_h, in_features = weight_ih.shape
    H = three_h // 3
    assert in_features == 2 * H + 1, "input must be [pre(H), post(H), reward(1)]"
    GP = ((H + 127) // 128) * 128            # 128-lane-aligned gate group width

    w_ih = jnp.asarray(weight_ih, jnp.float32)
    w_hh = jnp.asarray(weight_hh, jnp.float32)
    b_ih = jnp.asarray(bias_ih, jnp.float32)
    b_hh = jnp.asarray(bias_hh, jnp.float32)

    def padg(x2d):                            # (rows, H) -> (rows, GP)
        return jnp.pad(x2d, ((0, 0), (0, GP - H)))

    zeros_h = jnp.zeros((H, GP), jnp.float32)

    w_pre_t = w_ih[:, 0:H].T                  # (H, 3H)
    w_post_t = w_ih[:, H:2 * H].T             # (H, 3H)
    w_hh_t = w_hh.T                           # (H, 3H)

    def row_block(wt, has_x_n, has_h_n):
        return jnp.concatenate([
            padg(wt[:, 0:H]),                                      # r_sum
            padg(wt[:, H:2 * H]),                                  # z_sum
            padg(wt[:, 2 * H:3 * H]) if has_x_n else zeros_h,      # n_x
            padg(wt[:, 2 * H:3 * H]) if has_h_n else zeros_h,      # n_h
        ], axis=1)

    w_big = jnp.concatenate([
        row_block(w_pre_t, True, False),      # pre rows
        row_block(w_post_t, True, False),     # post rows
        row_block(w_hh_t, False, True),       # hidden rows
    ], axis=0)                                # (3H, 4*GP)

    w_rwd = w_ih[:, 2 * H]                    # (3H,) reward column of W_ih
    w_reward_row = jnp.concatenate([
        padg(w_rwd[0:H][None, :]),
        padg(w_rwd[H:2 * H][None, :]),
        padg(w_rwd[2 * H:3 * H][None, :]),
        jnp.zeros((1, GP), jnp.float32),
    ], axis=1)                                # (1, 4*GP)

    bias_row = jnp.concatenate([
        padg((b_ih[0:H] + b_hh[0:H])[None, :]),
        padg((b_ih[H:2 * H] + b_hh[H:2 * H])[None, :]),
        padg(b_ih[2 * H:3 * H][None, :]),
        padg(b_hh[2 * H:3 * H][None, :]),
    ], axis=1)                                # (1, 4*GP)

    return w_big, w_reward_row, bias_row


def _pick_batch_tile(batch):
    """Keep the whole batch resident when small; tile (multiple of 8) when large."""
    if batch <= 256:
        return batch
    for tb in (512, 256, 128, 64, 32, 16, 8):
        if batch % tb == 0:
            return tb
    return batch


def synapse_forward(pre_neurons, post_neurons, reward, hidden_state, lr,
                    fused_params):
    """Pallas wrapper reproducing Synapse.forward with pre-fused parameters.

    Returns (Synapse_output, updated_hidden_state), both (B, H) float32.
    """
    w_big, w_reward_row, bias_row = fused_params
    B, H = hidden_state.shape
    GP = w_big.shape[1] // 4
    TB = _pick_batch_tile(B)
    n_tiles = pl.cdiv(B, TB)
    lr_arr = jnp.asarray(lr, jnp.float32).reshape(1, 1)

    kernel = functools.partial(_synapse_kernel, hidden_size=H, gate_pad=GP)

    def batched(shape):        # tiled over the batch grid axis
        return pl.BlockSpec(shape, lambda i: (i, 0))

    def resident(shape):       # same block every grid step -> stays in VMEM
        return pl.BlockSpec(shape, lambda i: (0, 0))

    out_shapes = (
        jax.ShapeDtypeStruct((B, H), jnp.float32),   # Synapse_output
        jax.ShapeDtypeStruct((B, H), jnp.float32),   # updated_hidden_state
    )
    # TODO(synk): if the synapse is stepped recurrently, fold the time loop into
    # one pallas_call (grid=(T,), hidden in VMEM scratch) to amortize launch/DMA.
    return pl.pallas_call(
        kernel,
        out_shape=out_shapes,
        grid=(n_tiles,),
        in_specs=[
            pl.BlockSpec(memory_space=pltpu.MemorySpace.SMEM),  # lr scalar
            batched((TB, H)),                                   # pre_neurons
            batched((TB, H)),                                   # post_neurons
            batched((TB, 1)),                                   # reward
            batched((TB, H)),                                   # hidden_state
            resident(w_big.shape),                              # fused weight
            resident(w_reward_row.shape),                       # reward weight row
            resident(bias_row.shape),                           # bias row
        ],
        out_specs=(batched((TB, H)), batched((TB, H))),
        # updated hidden state reuses hidden_state's HBM buffer (in-place
        # recurrent update when called under jit/scan with donation).
        input_output_aliases={4: 1},
        compiler_params=pltpu.CompilerParams(
            dimension_semantics=("parallel",)),
    )(lr_arr, pre_neurons, post_neurons, reward, hidden_state,
      w_big, w_reward_row, bias_row)


def _reference(pre, post, reward, h, lr, w_ih, w_hh, b_ih, b_hh):
    """Pure-JAX reference matching torch.nn.GRUCell semantics (unfused weights)."""
    H = h.shape[1]
    x = jnp.concatenate([pre, post, reward], axis=1)
    gx = x @ w_ih.T + b_ih
    gh = h @ w_hh.T + b_hh
    r = jax.nn.sigmoid(gx[:, :H] + gh[:, :H])
    z = jax.nn.sigmoid(gx[:, H:2 * H] + gh[:, H:2 * H])
    n = jnp.tanh(gx[:, 2 * H:] + r * gh[:, 2 * H:])
    gru_out = (1.0 - z) * n + z * h
    new_h = h + gru_out * lr
    return new_h * pre, new_h


if __name__ == "__main__":
    # Shapes implied by the forward:
    #   pre_neurons (B, H), post_neurons (B, H), reward (B, 1)
    #   => input_size = 2*H + 1 ; hidden_state (B, H) ; lr scalar parameter.
    B, H = 8, 32
    I = 2 * H + 1

    key = jax.random.PRNGKey(0)
    keys = jax.random.split(key, 8)
    bound = 1.0 / jnp.sqrt(jnp.float32(H))   # PyTorch GRUCell init range

    pre_neurons = jax.random.normal(keys[0], (B, H), jnp.float32)
    post_neurons = jax.random.normal(keys[1], (B, H), jnp.float32)
    reward = jax.random.normal(keys[2], (B, 1), jnp.float32)
    hidden_state = jax.random.normal(keys[3], (B, H), jnp.float32)

    weight_ih = jax.random.uniform(keys[4], (3 * H, I), jnp.float32, -bound, bound)
    weight_hh = jax.random.uniform(keys[5], (3 * H, H), jnp.float32, -bound, bound)
    bias_ih = jax.random.uniform(keys[6], (3 * H,), jnp.float32, -bound, bound)
    bias_hh = jax.random.uniform(keys[7], (3 * H,), jnp.float32, -bound, bound)
    lr = jnp.float32(0.1)   # learnable learning-rate parameter (deterministic init)

    # One-time parameter re-layout (not in the per-step hot path).
    fused_params = jax.tree_util.tree_map(
        jax.block_until_ready, prepare_synapse_params(weight_ih, weight_hh,
                                                      bias_ih, bias_hh))

    syn_fwd = jax.jit(synapse_forward)
    syn_out, new_h = jax.block_until_ready(
        syn_fwd(pre_neurons, post_neurons, reward, hidden_state, lr, fused_params))

    ref_out, ref_h = _reference(pre_neurons, post_neurons, reward, hidden_state, lr,
                                weight_ih, weight_hh, bias_ih, bias_hh)
    assert jnp.allclose(syn_out, ref_out, atol=1e-5, rtol=1e-5)
    assert jnp.allclose(new_h, ref_h, atol=1e-5, rtol=1e-5)

    print("KERNEL_OK")
</pallas_src>

<mosaic_0001>
module attributes {stable_mosaic.version = 11 : i64} {
  func.func @_synapse_kernel(%arg0: i32, %arg1: memref<1x1xf32, #tpu.memory_space<smem>>, %arg2: memref<8x32xf32, #tpu.memory_space<vmem>>, %arg3: memref<8x32xf32, #tpu.memory_space<vmem>>, %arg4: memref<8x1xf32, #tpu.memory_space<vmem>>, %arg5: memref<8x32xf32, #tpu.memory_space<vmem>>, %arg6: memref<96x512xf32, #tpu.memory_space<vmem>>, %arg7: memref<1x512xf32, #tpu.memory_space<vmem>>, %arg8: memref<1x512xf32, #tpu.memory_space<vmem>>, %arg9: memref<8x32xf32, #tpu.memory_space<vmem>>, %arg10: memref<8x32xf32, #tpu.memory_space<vmem>>) attributes {dimension_semantics = [#tpu.dimension_semantics<parallel>], iteration_bounds = array<i64: 1>, scalar_prefetch = 0 : i64, scratch_operands = 0 : i64, tpu.core_type = #tpu.core_type<tc>, window_params = [{transform_indices = @transform_0, window_bounds = array<i64: 1, 1>}, {transform_indices = @transform_1, window_bounds = array<i64: 8, 32>}, {transform_indices = @transform_2, window_bounds = array<i64: 8, 32>}, {transform_indices = @transform_3, window_bounds = array<i64: 8, 1>}, {transform_indices = @transform_4, window_bounds = array<i64: 8, 32>}, {pipeline_mode = #tpu.pipeline_mode<synchronous>, transform_indices = @transform_5, window_bounds = array<i64: 96, 512>}, {pipeline_mode = #tpu.pipeline_mode<synchronous>, transform_indices = @transform_6, window_bounds = array<i64: 1, 512>}, {pipeline_mode = #tpu.pipeline_mode<synchronous>, transform_indices = @transform_7, window_bounds = array<i64: 1, 512>}, {transform_indices = @transform_8, window_bounds = array<i64: 8, 32>}, {transform_indices = @transform_9, window_bounds = array<i64: 8, 32>}]} {
    %c0 = arith.constant 0 : index
    %c0_0 = arith.constant 0 : index
    %0 = vector.load %arg2[%c0, %c0_0] : memref<8x32xf32, #tpu.memory_space<vmem>>, vector<8x32xf32>
    %c0_1 = arith.constant 0 : index
    %c0_2 = arith.constant 0 : index
    %1 = vector.load %arg3[%c0_1, %c0_2] : memref<8x32xf32, #tpu.memory_space<vmem>>, vector<8x32xf32>
    %c0_3 = arith.constant 0 : index
    %c0_4 = arith.constant 0 : index
    %2 = vector.load %arg5[%c0_3, %c0_4] : memref<8x32xf32, #tpu.memory_space<vmem>>, vector<8x32xf32>
    %c0_5 = arith.constant 0 : index
    %c0_6 = arith.constant 0 : index
    %3 = vector.load %arg4[%c0_5, %c0_6] : memref<8x1xf32, #tpu.memory_space<vmem>>, vector<8x1xf32>
    %4 = tpu.concatenate %0, %1, %2 in 1 : vector<8x32xf32>, vector<8x32xf32>, vector<8x32xf32> -> vector<8x96xf32>
    %c0_7 = arith.constant 0 : index
    %c0_8 = arith.constant 0 : index
    %5 = vector.load %arg6[%c0_7, %c0_8] : memref<96x512xf32, #tpu.memory_space<vmem>>, vector<96x512xf32>
    %cst = arith.constant dense<0.000000e+00> : vector<8x512xf32>
    %6 = tpu.matmul %4, %5, %cst {dimension_numbers = #tpu.dot_dimension_numbers<[1], [0], [0], [1], [0, 0, 1, 1], [], []>} : vector<8x96xf32>, vector<96x512xf32>, vector<8x512xf32> -> vector<8x512xf32>
    %c0_9 = arith.constant 0 : index
    %c0_10 = arith.constant 0 : index
    %7 = vector.load %arg7[%c0_9, %c0_10] : memref<1x512xf32, #tpu.memory_space<vmem>>, vector<1x512xf32>
    %8 = vector.broadcast %3 : vector<8x1xf32> to vector<8x512xf32>
    %9 = vector.broadcast %7 : vector<1x512xf32> to vector<8x512xf32>
    %10 = arith.mulf %8, %9 : vector<8x512xf32>
    %11 = arith.addf %6, %10 : vector<8x512xf32>
    %c0_11 = arith.constant 0 : index
    %c0_12 = arith.constant 0 : index
    %12 = vector.load %arg8[%c0_11, %c0_12] : memref<1x512xf32, #tpu.memory_space<vmem>>, vector<1x512xf32>
    %13 = vector.broadcast %12 : vector<1x512xf32> to vector<8x512xf32>
    %14 = arith.addf %11, %13 : vector<8x512xf32>
    %15 = vector.extract_strided_slice %14 {offsets = [0, 0], sizes = [8, 32], strides = [1, 1]} : vector<8x512xf32> to vector<8x32xf32>
    %16 = arith.negf %15 : vector<8x32xf32>
    %17 = math.exp %16 : vector<8x32xf32>
    %cst_13 = arith.constant 1.000000e+00 : f32
    %18 = vector.broadcast %cst_13 : f32 to vector<8x32xf32>
    %19 = arith.addf %18, %17 : vector<8x32xf32>
    %20 = arith.divf %18, %19 : vector<8x32xf32>
    %21 = vector.extract_strided_slice %14 {offsets = [0, 128], sizes = [8, 32], strides = [1, 1]} : vector<8x512xf32> to vector<8x32xf32>
    %22 = arith.negf %21 : vector<8x32xf32>
    %23 = math.exp %22 : vector<8x32xf32>
    %cst_14 = arith.constant 1.000000e+00 : f32
    %24 = vector.broadcast %cst_14 : f32 to vector<8x32xf32>
    %25 = arith.addf %24, %23 : vector<8x32xf32>
    %26 = arith.divf %24, %25 : vector<8x32xf32>
    %27 = vector.extract_strided_slice %14 {offsets = [0, 256], sizes = [8, 32], strides = [1, 1]} : vector<8x512xf32> to vector<8x32xf32>
    %28 = vector.extract_strided_slice %14 {offsets = [0, 384], sizes = [8, 32], strides = [1, 1]} : vector<8x512xf32> to vector<8x32xf32>
    %29 = arith.mulf %20, %28 : vector<8x32xf32>
    %30 = arith.addf %27, %29 : vector<8x32xf32>
    %31 = math.tanh %30 : vector<8x32xf32>
    %cst_15 = arith.constant 1.000000e+00 : f32
    %32 = vector.broadcast %cst_15 : f32 to vector<8x32xf32>
    %33 = arith.subf %32, %26 : vector<8x32xf32>
    %34 = arith.mulf %33, %31 : vector<8x32xf32>
    %35 = arith.mulf %26, %2 : vector<8x32xf32>
    %36 = arith.addf %34, %35 : vector<8x32xf32>
    %c0_16 = arith.constant 0 : index
    %c0_17 = arith.constant 0 : index
    %37 = memref.load %arg1[%c0_16, %c0_17] : memref<1x1xf32, #tpu.memory_space<smem>>
    %38 = vector.broadcast %37 : f32 to vector<8x32xf32>
    %39 = arith.mulf %36, %38 : vector<8x32xf32>
    %40 = arith.addf %2, %39 : vector<8x32xf32>
    %c0_18 = arith.constant 0 : index
    %c0_19 = arith.constant 0 : index
    %41 = vector.load %arg10[%c0_18, %c0_19] : memref<8x32xf32, #tpu.memory_space<vmem>>, vector<8x32xf32>
    tpu.vector_store %arg10[%c0_18, %c0_19], %40 {strides = array<i32>} : memref<8x32xf32, #tpu.memory_space<vmem>>, vector<8x32xf32>,
    %42 = arith.mulf %40, %0 : vector<8x32xf32>
    %c0_20 = arith.constant 0 : index
    %c0_21 = arith.constant 0 : index
    %43 = vector.load %arg9[%c0_20, %c0_21] : memref<8x32xf32, #tpu.memory_space<vmem>>, vector<8x32xf32>
    tpu.vector_store %arg9[%c0_20, %c0_21], %42 {strides = array<i32>} : memref<8x32xf32, #tpu.memory_space<vmem>>, vector<8x32xf32>,
    return
  }
  func.func @transform_0(%arg0: i32) -> (i32, i32) {
    %c0_i32 = arith.constant 0 : i32
    %c0_i32_0 = arith.constant 0 : i32
    %c0_i32_1 = arith.constant 0 : i32
    return %c0_i32, %c0_i32_0 : i32, i32
  }
  func.func @transform_1(%arg0: i32) -> (i32, i32) {
    %c0_i32 = arith.constant 0 : i32
    %c0_i32_0 = arith.constant 0 : i32
    return %arg0, %c0_i32 : i32, i32
  }
  func.func @transform_2(%arg0: i32) -> (i32, i32) {
    %c0_i32 = arith.constant 0 : i32
    %c0_i32_0 = arith.constant 0 : i32
    return %arg0, %c0_i32 : i32, i32
  }
  func.func @transform_3(%arg0: i32) -> (i32, i32) {
    %c0_i32 = arith.constant 0 : i32
    %c0_i32_0 = arith.constant 0 : i32
    return %arg0, %c0_i32 : i32, i32
  }
  func.func @transform_4(%arg0: i32) -> (i32, i32) {
    %c0_i32 = arith.constant 0 : i32
    %c0_i32_0 = arith.constant 0 : i32
    return %arg0, %c0_i32 : i32, i32
  }
  func.func @transform_5(%arg0: i32) -> (i32, i32) {
    %c0_i32 = arith.constant 0 : i32
    %c0_i32_0 = arith.constant 0 : i32
    %c0_i32_1 = arith.constant 0 : i32
    return %c0_i32, %c0_i32_0 : i32, i32
  }
  func.func @transform_6(%arg0: i32) -> (i32, i32) {
    %c0_i32 = arith.constant 0 : i32
    %c0_i32_0 = arith.constant 0 : i32
    %c0_i32_1 = arith.constant 0 : i32
    return %c0_i32, %c0_i32_0 : i32, i32
  }
  func.func @transform_7(%arg0: i32) -> (i32, i32) {
    %c0_i32 = arith.constant 0 : i32
    %c0_i32_0 = arith.constant 0 : i32
    %c0_i32_1 = arith.constant 0 : i32
    return %c0_i32, %c0_i32_0 : i32, i32
  }
  func.func @transform_8(%arg0: i32) -> (i32, i32) {
    %c0_i32 = arith.constant 0 : i32
    %c0_i32_0 = arith.constant 0 : i32
    return %arg0, %c0_i32 : i32, i32
  }
  func.func @transform_9(%arg0: i32) -> (i32, i32) {
    %c0_i32 = arith.constant 0 : i32
    %c0_i32_0 = arith.constant 0 : i32
    return %arg0, %c0_i32 : i32, i32
  }
}

</mosaic_0001>

<llo_original>
// kernel: synapse_forward.1
$region0: #{synapse_forward.1}
  #allocation0 [shape = 'u32[]', space=smem, size = 0x4, offset = 0x4, fixed_abs, tag = 'smem constant byte address 0x4 - core index']
  #allocation1 [shape = 'u32[144,128]{1,0:T(1,128)}', space=vmem, size = 0x12000, scoped, tag = 'internal scratch']
  #allocation2 [shape = 'f32[1,1]{1,0:T(1,128)S(6)}', space=smem, size = 0x200, scoped, tag = 'scoped memory for synapse_forward.1']
  %s0 = inlined_call_operand.<no memory space> [shape: f32[1,1], index: 0, kind: input, shape index: {}]
  %s1 = inlined_call_operand.vmem [shape: f32[8,32], index: 1, kind: input, shape index: {}]
  %s2 = inlined_call_operand.vmem [shape: f32[8,32], index: 2, kind: input, shape index: {}]
  %s3 = inlined_call_operand.vmem [shape: f32[8,1], index: 3, kind: input, shape index: {}]
  %s4 = inlined_call_operand.hbm [shape: f32[8,32], index: 4, kind: input, shape index: {}, may-alias: {4,9}]
  %s5 = inlined_call_operand.hbm [shape: f32[96,512], index: 5, kind: input, shape index: {}]
  %s6 = inlined_call_operand.vmem [shape: f32[1,512], index: 6, kind: input, shape index: {}]
  %s7 = inlined_call_operand.vmem [shape: f32[1,512], index: 7, kind: input, shape index: {}]
  %s8 = inlined_call_operand.hbm [shape: f32[8,32], index: 8, kind: output, shape index: {0}]
  %s9 = inlined_call_operand.hbm [shape: f32[8,32], index: 9, kind: output, shape index: {1}, may-alias: {4,9}]
  %10 = xla_tuple %s8, %s9
  %s11 = sld [smem:[#allocation0]]
  $region58: #{synapse_forward.1} parent=0
    _
  %s13 = ssub.s32 1, %s11
  %s14 = scalar_select 0, %s13, %s11
  %15 = sst [smem:[#allocation2]] %s0
  $region1: #{synapse_forward.1} parent=0
    #allocation3 [shape = 'u8[4096]{0}', space=vmem, size = 0x1000, scoped, tag = 'input window, operand 4, single buffered']
    #allocation4 [shape = 's32[1]{0}', space=sflag, size = 0x4, scoped, tag = 'scoped memory for synapse_forward.1']
    #allocation5 [shape = 's32[1]{0}', space=sflag, size = 0x4, scoped, tag = 'scoped memory for synapse_forward.1']
    #allocation6 [shape = 'u8[196608]{0}', space=vmem, size = 0x30000, scoped, tag = 'input window, operand 5, single buffered']
    #allocation7 [shape = 's32[1]{0}', space=sflag, size = 0x4, scoped, tag = 'scoped memory for synapse_forward.1']
    #allocation8 [shape = 'u8[4096]{0}', space=vmem, size = 0x1000, scoped, tag = 'output window, operand 0, single buffered']
    #allocation9 [shape = 'u8[4096]{0}', space=vmem, size = 0x1000, scoped, tag = 'output window, operand 1, single buffered']
    #allocation10 [shape = 's32[1]{0}', space=sflag, size = 0x4, scoped, tag = 'scoped memory for synapse_forward.1']
    %16 = vsyncpa [#allocation4], 0
    %17 = vsyncpa [#allocation7], 0
    %18 = vsyncpa [#allocation5], 0
    %19 = vsyncpa [#allocation10], 0
    // Predicated region
    $region2: #{synapse_forward.1} parent=1 // pred_check
      _
    $region3: #{synapse_forward.1} parent=1 // pred_check_branch
      %21 = sbr.rel (0) target = $region5
    $region4: #{synapse_forward.1} parent=1 // pred_region
      _
    $region5: #{synapse_forward.1} parent=1 // pred_fallthru
      _
    // Predicated region
    $region6: #{synapse_forward.1} parent=1 // pred_check
      _
    $region7: #{synapse_forward.1} parent=1 // pred_check_branch
      %23 = sbr.rel (0) target = $region9
    $region8: #{synapse_forward.1} parent=1 // pred_region
      _
    $region9: #{synapse_forward.1} parent=1 // pred_fallthru
      _
    // Predicated region
    $region10: #{synapse_forward.1} parent=1 // pred_check
      _
    $region11: #{synapse_forward.1} parent=1 // pred_check_branch
      %25 = sbr.rel (0) target = $region13
    $region12: #{synapse_forward.1} parent=1 // pred_region
      _
    $region13: #{synapse_forward.1} parent=1 // pred_fallthru
      _
    // Predicated region
    $region14: #{synapse_forward.1} parent=1 // pred_check
      _
    $region15: #{synapse_forward.1} parent=1 // pred_check_branch
      %27 = sbr.rel (0) target = $region17
    $region16: #{synapse_forward.1} parent=1 // pred_region
      _
    $region17: #{synapse_forward.1} parent=1 // pred_fallthru
      _
    // Predicated region
    $region18: #{synapse_forward.1} parent=1 // pred_check
      _
    $region19: #{synapse_forward.1} parent=1 // pred_check_branch
      %29 = sbr.rel (0) target = $region21
    $region20: #{synapse_forward.1} parent=1 // pred_region
      %s31 = ssub.s32 128, 128
      %32 = vsyncadd [#allocation4], %s31
      %s34 = sshll.u32 [#allocation3], 4
      %s35 = int_to_ptr.vmem [resolvable:$true] %s34
      %37 = dma.hbm_to_vmem [thread:$0]  %s4, 128, %s35, [#allocation4]
    $region21: #{synapse_forward.1} parent=1 // pred_fallthru
      _
    // Predicated region
    $region22: #{synapse_forward.1} parent=1 // pred_check
      _
    $region23: #{synapse_forward.1} parent=1 // pred_check_branch
      %39 = sbr.rel (0) target = $region25
    $region24: #{synapse_forward.1} parent=1 // pred_region
      %s41 = ssub.s32 6144, 6144
      %42 = vsyncadd [#allocation7], %s41
      %s43 = sshll.u32 [#allocation6], 4
      %s44 = int_to_ptr.vmem [resolvable:$true] %s43
      %49 = dma.hbm_to_vmem [thread:$0]  %s5, 6144, %s44, [#allocation7], 512, 512, 32
    $region25: #{synapse_forward.1} parent=1 // pred_fallthru
      _
    // Predicated region
    $region26: #{synapse_forward.1} parent=1 // pred_check
      _
    $region27: #{synapse_forward.1} parent=1 // pred_check_branch
      %51 = sbr.rel (0) target = $region29
    $region28: #{synapse_forward.1} parent=1 // pred_region
      _
    $region29: #{synapse_forward.1} parent=1 // pred_fallthru
      _
    // Predicated region
    $region30: #{synapse_forward.1} parent=1 // pred_check
      _
    $region31: #{synapse_forward.1} parent=1 // pred_check_branch
      %53 = sbr.rel (0) target = $region33
    $region32: #{synapse_forward.1} parent=1 // pred_region
      _
    $region33: #{synapse_forward.1} parent=1 // pred_fallthru
      _
    // Predicated region
    $region34: #{synapse_forward.1} parent=1 // pred_check
      _
    $region35: #{synapse_forward.1} parent=1 // pred_check_branch
      %55 = sbr.rel (0) target = $region37
    $region36: #{synapse_forward.1} parent=1 // pred_region
      %56 = dma.done [#allocation4], 128
    $region37: #{synapse_forward.1} parent=1 // pred_fallthru
      _
    // Predicated region
    $region38: #{synapse_forward.1} parent=1 // pred_check
      _
    $region39: #{synapse_forward.1} parent=1 // pred_check_branch
      %58 = sbr.rel (0) target = $region41
    $region40: #{synapse_forward.1} parent=1 // pred_region
      %59 = dma.done [#allocation7], 6144
    $region41: #{synapse_forward.1} parent=1 // pred_fallthru
      _
    %v60 = vld [vmem:[%s1] sm:$0xff]
    %v61 = vld [vmem:[%s2] sm:$0xff]
    %v62 = vld [vmem:[#allocation3] sm:$0xff]
    %v63 = vld [vmem:[%s3] sm:$0xff]
    %65 = vrot.lane.b32.xlu0 %v61, 32
    %v66 = vpop.permute.xlu0 %65
    %69 = vrot.lane.b32.xlu0 %v62, 64
    %v70 = vpop.permute.xlu0 %69
    %vm72 = vcmask 261120
    %v73 = vsel %vm72, %v60, %v66
    %vm74 = vcmask 523264
    %v75 = vsel %vm74, %v73, %v70
    %v76 = vld [vmem:[#allocation6] sm:$0xff]
    %v77 = vld [vmem:[#allocation6 + $0x8] sm:$0xff]
    %v78 = vld [vmem:[#allocation6 + $0x10] sm:$0xff]
    %v79 = vld [vmem:[#allocation6 + $0x18] sm:$0xff]
    %v80 = vld [vmem:[#allocation6 + $0x20] sm:$0xff]
    %v81 = vld [vmem:[#allocation6 + $0x28] sm:$0xff]
    %v82 = vld [vmem:[#allocation6 + $0x30] sm:$0xff]
    %v83 = vld [vmem:[#allocation6 + $0x38] sm:$0xff]
    %v84 = vld [vmem:[#allocation6 + $0x40] sm:$0xff]
    %v85 = vld [vmem:[#allocation6 + $0x48] sm:$0xff]
    %v86 = vld [vmem:[#allocation6 + $0x50] sm:$0xff]
    %v87 = vld [vmem:[#allocation6 + $0x58] sm:$0xff]
    %v88 = vld [vmem:[#allocation6 + $0x60] sm:$0xff]
    %v89 = vld [vmem:[#allocation6 + $0x68] sm:$0xff]
    %v90 = vld [vmem:[#allocation6 + $0x70] sm:$0xff]
    %v91 = vld [vmem:[#allocation6 + $0x78] sm:$0xff]
    %v92 = vld [vmem:[#allocation6 + $0x80] sm:$0xff]
    %v93 = vld [vmem:[#allocation6 + $0x88] sm:$0xff]
    %v94 = vld [vmem:[#allocation6 + $0x90] sm:$0xff]
    %v95 = vld [vmem:[#allocation6 + $0x98] sm:$0xff]
    %v96 = vld [vmem:[#allocation6 + $0xa0] sm:$0xff]
    %v97 = vld [vmem:[#allocation6 + $0xa8] sm:$0xff]
    %v98 = vld [vmem:[#allocation6 + $0xb0] sm:$0xff]
    %v99 = vld [vmem:[#allocation6 + $0xb8] sm:$0xff]
    %v100 = vld [vmem:[#allocation6 + $0xc0] sm:$0xff]
    %v101 = vld [vmem:[#allocation6 + $0xc8] sm:$0xff]
    %v102 = vld [vmem:[#allocation6 + $0xd0] sm:$0xff]
    %v103 = vld [vmem:[#allocation6 + $0xd8] sm:$0xff]
    %v104 = vld [vmem:[#allocation6 + $0xe0] sm:$0xff]
    %v105 = vld [vmem:[#allocation6 + $0xe8] sm:$0xff]
    %v106 = vld [vmem:[#allocation6 + $0xf0] sm:$0xff]
    %v107 = vld [vmem:[#allocation6 + $0xf8] sm:$0xff]
    %v108 = vld [vmem:[#allocation6 + $0x100] sm:$0xff]
    %v109 = vld [vmem:[#allocation6 + $0x108] sm:$0xff]
    %v110 = vld [vmem:[#allocation6 + $0x110] sm:$0xff]
    %v111 = vld [vmem:[#allocation6 + $0x118] sm:$0xff]
    %v112 = vld [vmem:[#allocation6 + $0x120] sm:$0xff]
    %v113 = vld [vmem:[#allocation6 + $0x128] sm:$0xff]
    %v114 = vld [vmem:[#allocation6 + $0x130] sm:$0xff]
    %v115 = vld [vmem:[#allocation6 + $0x138] sm:$0xff]
    %v116 = vld [vmem:[#allocation6 + $0x140] sm:$0xff]
    %v117 = vld [vmem:[#allocation6 + $0x148] sm:$0xff]
    %v118 = vld [vmem:[#allocation6 + $0x150] sm:$0xff]
    %v119 = vld [vmem:[#allocation6 + $0x158] sm:$0xff]
    %v120 = vld [vmem:[#allocation6 + $0x160] sm:$0xff]
    %v121 = vld [vmem:[#allocation6 + $0x168] sm:$0xff]
    %v122 = vld [vmem:[#allocation6 + $0x170] sm:$0xff]
    %v123 = vld [vmem:[#allocation6 + $0x178] sm:$0xff]
    %v124 = vld [vmem:[%s6] sm:$0xf]
    %126 = vset.pattern.permute.xlu0 0
    %127 = vperm.xlu0 %126, %v63
    %v128 = vpop.permute.xlu0 %127
    %v131 = vlaneseq
    %v132 = vshrl.u32 %v131, 7
    %v133 = vsub.s32 0, %v132
    %v134 = vrot.slane %v124, %v133
    %v135 = vlaneseq
    %v136 = vshrl.u32 %v135, 7
    %v137 = vsub.s32 1, %v136
    %v138 = vrot.slane %v124, %v137
    %v139 = vlaneseq
    %v140 = vshrl.u32 %v139, 7
    %v141 = vsub.s32 2, %v140
    %v142 = vrot.slane %v124, %v141
    %v143 = vlaneseq
    %v144 = vshrl.u32 %v143, 7
    %v145 = vsub.s32 3, %v144
    %v146 = vrot.slane %v124, %v145
    %v151 = vmul.f32 %v128, %v134
    %v152 = vmul.f32 %v128, %v138
    %v153 = vmul.f32 %v128, %v142
    %v154 = vmul.f32 %v128, %v146
    %vm155 = vcmask 785408
    %v157 = vsel %vm155, %v75, 0
    %159 = vmatprep.subr.mxu0 %v77
    %160 = vmatpush1.msra.mxu0 %v76
    %161 = vmatprep.subr.mxu0 %v81
    %162 = vmatpush1.msra.mxu0 %v80
    %163 = vmatprep.subr.mxu0 %v85
    %164 = vmatpush1.msra.mxu0 %v84
    %165 = vmatprep.subr.mxu0 %v89
    %166 = vmatpush1.msra.mxu0 %v88
    %167 = vmatprep.subr.mxu0 %v93
    %168 = vmatpush1.msra.mxu0 %v92
    %169 = vmatprep.subr.mxu0 %v97
    %170 = vmatpush1.msra.mxu0 %v96
    %171 = vmatprep.subr.mxu0 %v101
    %172 = vmatpush1.msra.mxu0 %v100
    %173 = vmatprep.subr.mxu0 %v105
    %174 = vmatpush1.msra.mxu0 %v104
    %175 = vmatprep.subr.mxu0 %v109
    %176 = vmatpush1.msra.mxu0 %v108
    %177 = vmatprep.subr.mxu0 %v113
    %178 = vmatpush1.msra.mxu0 %v112
    %179 = vmatprep.subr.mxu0 %v117
    %180 = vmatpush1.msra.mxu0 %v116
    %181 = vmatprep.subr.mxu0 %v121
    %182 = vmatpush1.msra.mxu0 %v120
    %183 = vmatprep.subr.mxu0 0.0
    %184 = vmatpush1.msra.mxu0 0.0
    %185 = vmatprep.subr.mxu0 0.0
    %186 = vmatpush1.msra.mxu0 0.0
    %187 = vmatprep.subr.mxu0 0.0
    %188 = vmatpush1.msra.mxu0 0.0
    %189 = vmatprep.subr.mxu0 0.0
    %190 = vmatpush1.msra.mxu0 0.0
    %191 = vmatprep.subr.mxu0 0.0
    %192 = vmatpush1.msra.mxu0 0.0
    %193 = vmatprep.subr.mxu0 0.0
    %194 = vmatpush1.msra.mxu0 0.0
    %195 = vmatprep.subr.mxu0 0.0
    %196 = vmatpush1.msra.mxu0 0.0
    %197 = vmatprep.subr.mxu0 0.0
    %198 = vmatpush1.msra.mxu0 0.0
    %199 = vmatprep.subr.mxu0 0.0
    %200 = vmatpush1.msra.mxu0 0.0
    %201 = vmatprep.subr.mxu0 0.0
    %202 = vmatpush1.msra.mxu0 0.0
    %203 = vmatprep.subr.mxu0 0.0
    %204 = vmatpush1.msra.mxu0 0.0
    %205 = vmatprep.subr.mxu0 0.0
    %206 = vmatpush1.msra.mxu0 0.0
    %207 = vmatprep.subr.mxu0 0.0
    %208 = vmatpush1.msra.mxu0 0.0
    %209 = vmatprep.subr.mxu0 0.0
    %210 = vmatpush1.msra.mxu0 0.0
    %211 = vmatprep.subr.mxu0 0.0
    %212 = vmatpush1.msra.mxu0 0.0
    %213 = vmatprep.subr.mxu0 0.0
    %214 = vmatpush1.msra.mxu0 0.0
    %215 = vmatprep.subr.mxu0 0.0
    %216 = vmatpush1.msra.mxu0 0.0
    %217 = vmatprep.subr.mxu0 0.0
    %218 = vmatpush1.msra.mxu0 0.0
    %219 = vmatprep.subr.mxu0 0.0
    %220 = vmatpush1.msra.mxu0 0.0
    %221 = vmatprep.subr.mxu0 0.0
    %222 = vmatpush1.msra.mxu0 0.0
    %223 = vmatprep.mubr.f32.mxu0 0.0
    %224 = vmatmul.mubr.f32.gmra.mrb[0].mxu0 %v157
    %v225 = vpop.f32.mrb[0].mxu0
    %v226 = vadd.f32 %v151, %v225
    %v227 = vpop.f32.mrb[0].mxu0
    %v228 = vadd.f32 %v152, %v227
    %229 = vdwg.mxu0
    %230 = vmatprep.subr.mxu0 %v79
    %231 = vmatpush1.msra.mxu0 %v78
    %232 = vmatprep.subr.mxu0 %v83
    %233 = vmatpush1.msra.mxu0 %v82
    %234 = vmatprep.subr.mxu0 %v87
    %235 = vmatpush1.msra.mxu0 %v86
    %236 = vmatprep.subr.mxu0 %v91
    %237 = vmatpush1.msra.mxu0 %v90
    %238 = vmatprep.subr.mxu0 %v95
    %239 = vmatpush1.msra.mxu0 %v94
    %240 = vmatprep.subr.mxu0 %v99
    %241 = vmatpush1.msra.mxu0 %v98
    %242 = vmatprep.subr.mxu0 %v103
    %243 = vmatpush1.msra.mxu0 %v102
    %244 = vmatprep.subr.mxu0 %v107
    %245 = vmatpush1.msra.mxu0 %v106
    %246 = vmatprep.subr.mxu0 %v111
    %247 = vmatpush1.msra.mxu0 %v110
    %248 = vmatprep.subr.mxu0 %v115
    %249 = vmatpush1.msra.mxu0 %v114
    %250 = vmatprep.subr.mxu0 %v119
    %251 = vmatpush1.msra.mxu0 %v118
    %252 = vmatprep.subr.mxu0 %v123
    %253 = vmatpush1.msra.mxu0 %v122
    %254 = vmatprep.subr.mxu0 0.0
    %255 = vmatpush1.msra.mxu0 0.0
    %256 = vmatprep.subr.mxu0 0.0
    %257 = vmatpush1.msra.mxu0 0.0
    %258 = vmatprep.subr.mxu0 0.0
    %259 = vmatpush1.msra.mxu0 0.0
    %260 = vmatprep.subr.mxu0 0.0
    %261 = vmatpush1.msra.mxu0 0.0
    %262 = vmatprep.subr.mxu0 0.0
    %263 = vmatpush1.msra.mxu0 0.0
    %264 = vmatprep.subr.mxu0 0.0
    %265 = vmatpush1.msra.mxu0 0.0
    %266 = vmatprep.subr.mxu0 0.0
    %267 = vmatpush1.msra.mxu0 0.0
    %268 = vmatprep.subr.mxu0 0.0
    %269 = vmatpush1.msra.mxu0 0.0
    %270 = vmatprep.subr.mxu0 0.0
    %271 = vmatpush1.msra.mxu0 0.0
    %272 = vmatprep.subr.mxu0 0.0
    %273 = vmatpush1.msra.mxu0 0.0
    %274 = vmatprep.subr.mxu0 0.0
    %275 = vmatpush1.msra.mxu0 0.0
    %276 = vmatprep.subr.mxu0 0.0
    %277 = vmatpush1.msra.mxu0 0.0
    %278 = vmatprep.subr.mxu0 0.0
    %279 = vmatpush1.msra.mxu0 0.0
    %280 = vmatprep.subr.mxu0 0.0
    %281 = vmatpush1.msra.mxu0 0.0
    %282 = vmatprep.subr.mxu0 0.0
    %283 = vmatpush1.msra.mxu0 0.0
    %284 = vmatprep.subr.mxu0 0.0
    %285 = vmatpush1.msra.mxu0 0.0
    %286 = vmatprep.subr.mxu0 0.0
    %287 = vmatpush1.msra.mxu0 0.0
    %288 = vmatprep.subr.mxu0 0.0
    %289 = vmatpush1.msra.mxu0 0.0
    %290 = vmatprep.subr.mxu0 0.0
    %291 = vmatpush1.msra.mxu0 0.0
    %292 = vmatprep.subr.mxu0 0.0
    %293 = vmatpush1.msra.mxu0 0.0
    %294 = vmatprep.mubr.f32.mxu0 0.0
    %295 = vmatmul.mubr.f32.gmra.mrb[0].mxu0 %v157
    %v296 = vpop.f32.mrb[0].mxu0
    %v297 = vadd.f32 %v153, %v296
    %v298 = vpop.f32.mrb[0].mxu0
    %v299 = vadd.f32 %v154, %v298
    %300 = vdwg.mxu0
    %v301 = vld [vmem:[%s7] sm:$0xf]
    %v303 = vlaneseq
    %v304 = vshrl.u32 %v303, 7
    %v305 = vsub.s32 0, %v304
    %v306 = vrot.slane %v301, %v305
    %v307 = vlaneseq
    %v308 = vshrl.u32 %v307, 7
    %v309 = vsub.s32 1, %v308
    %v310 = vrot.slane %v301, %v309
    %v311 = vlaneseq
    %v312 = vshrl.u32 %v311, 7
    %v313 = vsub.s32 2, %v312
    %v314 = vrot.slane %v301, %v313
    %v315 = vlaneseq
    %v316 = vshrl.u32 %v315, 7
    %v317 = vsub.s32 3, %v316
    %v318 = vrot.slane %v301, %v317
    %v323 = vadd.f32 %v226, %v306
    %v324 = vadd.f32 %v228, %v310
    %v325 = vadd.f32 %v297, %v314
    %v326 = vadd.f32 %v299, %v318
    %v327 = vxor.u32 %v323, 2147483648
    %v328 = vmul.f32 %v327, 1.442695
    %v329 = vpow.pop %v328
    %v330 = vadd.f32 %v329, 1.0
    %v331 = vrcp.pop %v330
    %v332 = vmul.f32 1.0, %v331
    %v333 = vxor.u32 %v324, 2147483648
    %v334 = vmul.f32 %v333, 1.442695
    %v335 = vpow.pop %v334
    %v336 = vadd.f32 %v335, 1.0
    %v337 = vrcp.pop %v336
    %v338 = vmul.f32 1.0, %v337
    %v339 = vmul.f32 %v332, %v326
    %v340 = vadd.f32 %v325, %v339
    %v341 = vtanh.pop %v340
    %v342 = vsub.f32 1.0, %v338
    %v343 = vmul.f32 %v342, %v341
    %v344 = vmul.f32 %v338, %v62
    %v345 = vadd.f32 %v343, %v344
    %s346 = sld [smem:[#allocation2]]
    %v347 = vstv %s346
    %v348 = vmul.f32 %v345, %v347
    %v349 = vadd.f32 %v62, %v348
    %350 = vst.msk [vmem:[#allocation9] sm:$0xff] %vm72, %v349
    %v351 = vmul.f32 %v349, %v60
    %352 = vst.msk [vmem:[#allocation8] sm:$0xff] %vm72, %v351
    // Predicated region
    $region42: #{synapse_forward.1} parent=1 // pred_check
      _
    $region43: #{synapse_forward.1} parent=1 // pred_check_branch
      %354 = sbr.rel (0) target = $region45
    $region44: #{synapse_forward.1} parent=1 // pred_region
      %s356 = ssub.s32 128, 128
      %357 = vsyncadd [#allocation5], %s356
      %s359 = sshll.u32 [#allocation8], 4
      %s360 = int_to_ptr.vmem [resolvable:$true] %s359
      %362 = dma.vmem_to_hbm [thread:$0]  %s360, 128, %s8, [#allocation5]
    $region45: #{synapse_forward.1} parent=1 // pred_fallthru
      _
    // Predicated region
    $region46: #{synapse_forward.1} parent=1 // pred_check
      _
    $region47: #{synapse_forward.1} parent=1 // pred_check_branch
      %364 = sbr.rel (0) target = $region49
    $region48: #{synapse_forward.1} parent=1 // pred_region
      %s366 = ssub.s32 128, 128
      %367 = vsyncadd [#allocation10], %s366
      %s369 = sshll.u32 [#allocation9], 4
      %s370 = int_to_ptr.vmem [resolvable:$true] %s369
      %372 = dma.vmem_to_hbm [thread:$0]  %s370, 128, %s9, [#allocation10]
    $region49: #{synapse_forward.1} parent=1 // pred_fallthru
      _
    // Predicated region
    $region50: #{synapse_forward.1} parent=1 // pred_check
      _
    $region51: #{synapse_forward.1} parent=1 // pred_check_branch
      %374 = sbr.rel (0) target = $region53
    $region52: #{synapse_forward.1} parent=1 // pred_region
      %375 = dma.done [#allocation5], 128
    $region53: #{synapse_forward.1} parent=1 // pred_fallthru
      _
    // Predicated region
    $region54: #{synapse_forward.1} parent=1 // pred_check
      _
    $region55: #{synapse_forward.1} parent=1 // pred_check_branch
      %377 = sbr.rel (0) target = $region57
    $region56: #{synapse_forward.1} parent=1 // pred_region
      %378 = dma.done [#allocation10], 128
    $region57: #{synapse_forward.1} parent=1 // pred_fallthru
      _
    %379 = vsyncpa [#allocation4], 1
    %380 = vsyncpa [#allocation7], 1
    %381 = vsyncpa [#allocation5], 1
    %382 = vsyncpa [#allocation10], 1

</llo_original>
